<compile_context>
chip_gen: v6e
topology: v6e:2x2x1
jax: 0.10.0
libtpu: 0.0.40
codegen_flags: <defaults>
</compile_context>

<pallas_src>
import functools

import jax
import jax.numpy as jnp
from jax.experimental import pallas as pl
from jax.experimental.pallas import tpu as pltpu

BN_EPS = 1e-5
K_OFFSET_PER_CHANNEL = 2  # hparams.MODEL.ACTIVE_BLOCK.OFFSET_PER_CHANNEL


# --------------------------------------------------------------------------- #
# Kernel
# --------------------------------------------------------------------------- #
def active_block_kernel(x_ref, wx_ref, bx_ref, wpost_ref, o_ref, *, cc, compute_dtype):
    """One (C, tile_cols) spatial tile of one batch image.

    x_ref:     (Cin, T)           input pixels, channels in sublanes, spatial in lanes
    wx_ref:    (2*Cc + Cout, Cin) concatenated folded x-weights [main; atten; downsample]
    bx_ref:    (2*Cc + Cout, 1)   concatenated folded biases (lane-broadcast)
    wpost_ref: (Cout, Cc)         BN-folded post_offset weight
    o_ref:     (Cout, T)          output tile
    """
    x = x_ref[...].astype(compute_dtype)
    wx = wx_ref[...].astype(compute_dtype)

    # Single x-consuming matmul: [main; atten_lin; downsample] stacked on sublanes.
    y = jnp.dot(wx, x, preferred_element_type=jnp.float32) + bx_ref[...]

    main = y[:cc, :]                        # = aconv(pre_offset(x))   (fold exact)
    att = jax.nn.sigmoid(y[cc:2 * cc, :])   # = sigmoid(BN(atten_conv(x)))
    ds = y[2 * cc:, :]                      # = bn_scale*downsample(x) + bn_scale*b_post + bn_shift

    gated = (main * att).astype(compute_dtype)
    wpost = wpost_ref[...].astype(compute_dtype)

    # relu(BN(downsample(x) + post_offset(main*att)))  with BN folded into weights/bias.
    out = jnp.dot(wpost, gated, preferred_element_type=jnp.float32) + ds
    o_ref[...] = jnp.maximum(out, 0.0).astype(o_ref.dtype)


# --------------------------------------------------------------------------- #
# Wrapper
# --------------------------------------------------------------------------- #
def _pick_tile_cols(hw, max_cols):
    """Largest multiple-of-128 divisor of hw (<= max_cols); else the full extent."""
    if hw % 128 != 0:
        return hw  # full-extent last dim is always legal
    best = 128
    c = 128
    limit = min(hw, max_cols)
    while c <= limit:
        if hw % c == 0:
            best = c
        c += 128
    return best


def active_block_forward(x_nchw, params, *, max_tile_cols=8192,
                         compute_dtype=jnp.float32):
    """x_nchw: (B, Cin, H, W) float32 -> (B, Cout, H, W) float32.

    compute_dtype=jnp.bfloat16 can be used on v5e for bf16-native MXU matmuls
    (accumulation stays f32 via preferred_element_type); default keeps exact f32.
    """
    B, Cin, H, W = x_nchw.shape
    w_x, b_x, w_post = params["w_x"], params["b_x"], params["w_post"]
    cc = int(params["conv_planes"])
    Cout = w_post.shape[0]
    HW = H * W

    tile_cols = _pick_tile_cols(HW, max_tile_cols)
    assert HW % tile_cols == 0

    # Zero-copy: NCHW already has channels on sublanes / spatial on lanes.
    x3 = x_nchw.reshape(B, Cin, HW)

    kernel = functools.partial(active_block_kernel, cc=cc, compute_dtype=compute_dtype)

    grid_spec = pltpu.PrefetchScalarGridSpec(
        num_scalar_prefetch=0,
        grid=(B, HW // tile_cols),
        in_specs=[
            pl.BlockSpec((pl.Squeezed(), Cin, tile_cols), lambda b, j: (b, 0, j)),
            pl.BlockSpec(w_x.shape, lambda b, j: (0, 0)),      # resident across grid
            pl.BlockSpec(b_x.shape, lambda b, j: (0, 0)),
            pl.BlockSpec(w_post.shape, lambda b, j: (0, 0)),
        ],
        out_specs=pl.BlockSpec((pl.Squeezed(), Cout, tile_cols), lambda b, j: (b, 0, j)),
    )

    out3 = pl.pallas_call(
        kernel,
        out_shape=jax.ShapeDtypeStruct((B, Cout, HW), jnp.float32),
        grid_spec=grid_spec,
        compiler_params=pltpu.CompilerParams(
            dimension_semantics=("parallel", "parallel")),
    )(x3, w_x, b_x, w_post)

    return out3.reshape(B, Cout, H, W)


# --------------------------------------------------------------------------- #
# Parameters: raw module-shaped params + exact linear folds
# --------------------------------------------------------------------------- #
def make_params(key, inplanes, conv_planes, outplanes, k_rep):
    num_offset = conv_planes * k_rep
    keys = jax.random.split(key, 16)
    norm = lambda k, shape, s=0.1: (s * jax.random.normal(k, shape)).astype(jnp.float32)

    raw = {
        # pre_offset: Conv2d(inplanes, conv_planes, 1)
        "w_pre": norm(keys[0], (conv_planes, inplanes)),
        "b_pre": norm(keys[1], (conv_planes,)),
        # aconv.conv: Conv2d(num_offset, conv_planes, 1)
        "w_aconv": norm(keys[2], (conv_planes, num_offset)),
        "b_aconv": norm(keys[3], (conv_planes,)),
        # atten: Conv2d(inplanes, conv_planes, 1) + BatchNorm2d + Sigmoid
        "w_att": norm(keys[4], (conv_planes, inplanes)),
        "b_att": norm(keys[5], (conv_planes,)),
        "att_gamma": 1.0 + norm(keys[6], (conv_planes,)),
        "att_beta": norm(keys[7], (conv_planes,)),
        "att_rm": norm(keys[8], (conv_planes,)),
        "att_rv": 1.0 + 0.1 * jnp.abs(jax.random.normal(keys[9], (conv_planes,))).astype(jnp.float32),
        # post_offset: Conv2d(conv_planes, outplanes, 1)
        "w_post": norm(keys[10], (outplanes, conv_planes)),
        "b_post": norm(keys[11], (outplanes,)),
        # downsample: Conv2d(inplanes, outplanes, 1, bias=False)
        "w_ds": norm(keys[12], (outplanes, inplanes)),
        # final BatchNorm2d(outplanes), eval mode
        "bn_gamma": 1.0 + norm(keys[13], (outplanes,)),
        "bn_beta": norm(keys[14], (outplanes,)),
        "bn_rm": norm(keys[15], (outplanes,)),
        "bn_rv": jnp.ones((outplanes,), jnp.float32),
        "k_rep": k_rep,
    }

    # --- exact folds ---
    # Channel repeat in ActiveConv uses view+repeat -> repeated index is c*K + k,
    # and DisplaceChannel is identity at zero-offset init, so sum the K replicas.
    w_ac_eff = raw["w_aconv"].reshape(conv_planes, conv_planes, k_rep).sum(axis=2)
    w_main = w_ac_eff @ raw["w_pre"]                       # (Cc, Cin)
    b_main = w_ac_eff @ raw["b_pre"] + raw["b_aconv"]      # (Cc,)

    att_scale = raw["att_gamma"] / jnp.sqrt(raw["att_rv"] + BN_EPS)
    att_shift = raw["att_beta"] - raw["att_rm"] * att_scale
    w_att_f = att_scale[:, None] * raw["w_att"]            # (Cc, Cin)
    b_att_f = att_scale * raw["b_att"] + att_shift         # (Cc,)

    bn_scale = raw["bn_gamma"] / jnp.sqrt(raw["bn_rv"] + BN_EPS)
    bn_shift = raw["bn_beta"] - raw["bn_rm"] * bn_scale
    w_ds_f = bn_scale[:, None] * raw["w_ds"]               # (Cout, Cin)
    b_ds_f = bn_scale * raw["b_post"] + bn_shift           # (Cout,)  (post bias + BN shift)
    w_post_f = bn_scale[:, None] * raw["w_post"]           # (Cout, Cc)

    params = {
        "w_x": jnp.concatenate([w_main, w_att_f, w_ds_f], axis=0),            # (2Cc+Cout, Cin)
        "b_x": jnp.concatenate([b_main, b_att_f, b_ds_f], axis=0)[:, None],   # (2Cc+Cout, 1)
        "w_post": w_post_f,                                                   # (Cout, Cc)
        "conv_planes": conv_planes,
    }
    return params, raw


# --------------------------------------------------------------------------- #
# Pure-JAX reference of the original (unfolded) module forward, for validation
# --------------------------------------------------------------------------- #
def reference_forward(x_nchw, raw):
    B, Cin, H, W = x_nchw.shape
    x = x_nchw.reshape(B, Cin, H * W)
    hp = jax.lax.Precision.HIGHEST

    def conv1x1(w, b, t):
        out = jnp.einsum("oi,bis->bos", w, t, precision=hp)
        return out if b is None else out + b[None, :, None]

    out_pre = conv1x1(raw["w_pre"], raw["b_pre"], x)
    rep = jnp.repeat(out_pre, raw["k_rep"], axis=1)   # channel index c*K+k (matches view+repeat)
    out_dis = conv1x1(raw["w_aconv"], raw["b_aconv"], rep)   # displace == identity at init

    att_scale = raw["att_gamma"] / jnp.sqrt(raw["att_rv"] + BN_EPS)
    att_shift = raw["att_beta"] - raw["att_rm"] * att_scale
    att_lin = conv1x1(raw["w_att"], raw["b_att"], x)
    att = jax.nn.sigmoid(att_lin * att_scale[None, :, None] + att_shift[None, :, None])
    out_dis = out_dis * att

    out_post = conv1x1(raw["w_post"], raw["b_post"], out_dis)
    x_ds = conv1x1(raw["w_ds"], None, x)
    skip = x_ds + out_post

    bn_scale = raw["bn_gamma"] / jnp.sqrt(raw["bn_rv"] + BN_EPS)
    bn_shift = raw["bn_beta"] - raw["bn_rm"] * bn_scale
    out = jnp.maximum(skip * bn_scale[None, :, None] + bn_shift[None, :, None], 0.0)
    return out.reshape(B, -1, H, W)


if __name__ == "__main__":
    B, Cin, H, W = 2, 4, 16, 16
    conv_planes, Cout = 8, 8

    key = jax.random.PRNGKey(0)
    kx, kp = jax.random.split(key)
    x = jax.random.normal(kx, (B, Cin, H, W), dtype=jnp.float32)
    params, raw = make_params(kp, Cin, conv_planes, Cout, K_OFFSET_PER_CHANNEL)

    out = jax.block_until_ready(active_block_forward(x, params))
    assert out.shape == (B, Cout, H, W)
    assert bool(jnp.all(jnp.isfinite(out)))

    ref = jax.block_until_ready(reference_forward(x, raw))
    max_err = float(jnp.max(jnp.abs(out - ref)))
    assert max_err < 1e-3, f"mismatch vs reference: {max_err}"

    print("KERNEL_OK")
</pallas_src>

<mosaic_0001>
module attributes {stable_mosaic.version = 11 : i64} {
  func.func @active_block_kernel(%arg0: i32, %arg1: i32, %arg2: memref<1x4x256xf32, #tpu.memory_space<vmem>>, %arg3: memref<24x4xf32, #tpu.memory_space<vmem>>, %arg4: memref<24x1xf32, #tpu.memory_space<vmem>>, %arg5: memref<8x8xf32, #tpu.memory_space<vmem>>, %arg6: memref<1x8x256xf32, #tpu.memory_space<vmem>>) attributes {dimension_semantics = [#tpu.dimension_semantics<parallel>, #tpu.dimension_semantics<parallel>], iteration_bounds = array<i64: 2, 1>, scalar_prefetch = 0 : i64, scratch_operands = 0 : i64, tpu.core_type = #tpu.core_type<tc>, window_params = [{transform_indices = @transform_0, window_bounds = array<i64: 1, 4, 256>}, {pipeline_mode = #tpu.pipeline_mode<synchronous>, transform_indices = @transform_1, window_bounds = array<i64: 24, 4>}, {pipeline_mode = #tpu.pipeline_mode<synchronous>, transform_indices = @transform_2, window_bounds = array<i64: 24, 1>}, {pipeline_mode = #tpu.pipeline_mode<synchronous>, transform_indices = @transform_3, window_bounds = array<i64: 8, 8>}, {transform_indices = @transform_4, window_bounds = array<i64: 1, 8, 256>}]} {
    %c0 = arith.constant 0 : index
    %c0_0 = arith.constant 0 : index
    %c0_1 = arith.constant 0 : index
    %0 = vector.load %arg2[%c0, %c0_0, %c0_1] : memref<1x4x256xf32, #tpu.memory_space<vmem>>, vector<1x4x256xf32>
    %1 = vector.shape_cast %0 : vector<1x4x256xf32> to vector<4x256xf32>
    %c0_2 = arith.constant 0 : index
    %c0_3 = arith.constant 0 : index
    %2 = vector.load %arg3[%c0_2, %c0_3] : memref<24x4xf32, #tpu.memory_space<vmem>>, vector<24x4xf32>
    %cst = arith.constant dense<0.000000e+00> : vector<24x256xf32>
    %3 = tpu.matmul %2, %1, %cst {dimension_numbers = #tpu.dot_dimension_numbers<[1], [0], [0], [1], [0, 0, 1, 1], [], []>} : vector<24x4xf32>, vector<4x256xf32>, vector<24x256xf32> -> vector<24x256xf32>
    %c0_4 = arith.constant 0 : index
    %c0_5 = arith.constant 0 : index
    %4 = vector.load %arg4[%c0_4, %c0_5] : memref<24x1xf32, #tpu.memory_space<vmem>>, vector<24x1xf32>
    %5 = vector.broadcast %4 : vector<24x1xf32> to vector<24x256xf32>
    %6 = arith.addf %3, %5 : vector<24x256xf32>
    %7 = vector.extract_strided_slice %6 {offsets = [0, 0], sizes = [8, 256], strides = [1, 1]} : vector<24x256xf32> to vector<8x256xf32>
    %8 = vector.extract_strided_slice %6 {offsets = [8, 0], sizes = [8, 256], strides = [1, 1]} : vector<24x256xf32> to vector<8x256xf32>
    %9 = arith.negf %8 : vector<8x256xf32>
    %10 = math.exp %9 : vector<8x256xf32>
    %cst_6 = arith.constant 1.000000e+00 : f32
    %11 = vector.broadcast %cst_6 : f32 to vector<8x256xf32>
    %12 = arith.addf %11, %10 : vector<8x256xf32>
    %13 = arith.divf %11, %12 : vector<8x256xf32>
    %14 = vector.extract_strided_slice %6 {offsets = [16, 0], sizes = [8, 256], strides = [1, 1]} : vector<24x256xf32> to vector<8x256xf32>
    %15 = arith.mulf %7, %13 : vector<8x256xf32>
    %c0_7 = arith.constant 0 : index
    %c0_8 = arith.constant 0 : index
    %16 = vector.load %arg5[%c0_7, %c0_8] : memref<8x8xf32, #tpu.memory_space<vmem>>, vector<8x8xf32>
    %cst_9 = arith.constant dense<0.000000e+00> : vector<8x256xf32>
    %17 = tpu.matmul %16, %15, %cst_9 {dimension_numbers = #tpu.dot_dimension_numbers<[1], [0], [0], [1], [0, 0, 1, 1], [], []>} : vector<8x8xf32>, vector<8x256xf32>, vector<8x256xf32> -> vector<8x256xf32>
    %18 = arith.addf %17, %14 : vector<8x256xf32>
    %cst_10 = arith.constant 0.000000e+00 : f32
    %19 = vector.broadcast %cst_10 : f32 to vector<8x256xf32>
    %20 = arith.maximumf %18, %19 : vector<8x256xf32>
    %c0_11 = arith.constant 0 : index
    %c0_12 = arith.constant 0 : index
    %c0_13 = arith.constant 0 : index
    %21 = vector.load %arg6[%c0_11, %c0_12, %c0_13] : memref<1x8x256xf32, #tpu.memory_space<vmem>>, vector<1x8x256xf32>
    %22 = vector.shape_cast %21 : vector<1x8x256xf32> to vector<8x256xf32>
    %23 = vector.shape_cast %20 : vector<8x256xf32> to vector<1x8x256xf32>
    tpu.vector_store %arg6[%c0_11, %c0_12, %c0_13], %23 {strides = array<i32>} : memref<1x8x256xf32, #tpu.memory_space<vmem>>, vector<1x8x256xf32>,
    return
  }
  func.func @transform_0(%arg0: i32, %arg1: i32) -> (i32, i32, i32) {
    %c0_i32 = arith.constant 0 : i32
    %c0_i32_0 = arith.constant 0 : i32
    return %arg0, %c0_i32, %arg1 : i32, i32, i32
  }
  func.func @transform_1(%arg0: i32, %arg1: i32) -> (i32, i32) {
    %c0_i32 = arith.constant 0 : i32
    %c0_i32_0 = arith.constant 0 : i32
    %c0_i32_1 = arith.constant 0 : i32
    return %c0_i32, %c0_i32_0 : i32, i32
  }
  func.func @transform_2(%arg0: i32, %arg1: i32) -> (i32, i32) {
    %c0_i32 = arith.constant 0 : i32
    %c0_i32_0 = arith.constant 0 : i32
    %c0_i32_1 = arith.constant 0 : i32
    return %c0_i32, %c0_i32_0 : i32, i32
  }
  func.func @transform_3(%arg0: i32, %arg1: i32) -> (i32, i32) {
    %c0_i32 = arith.constant 0 : i32
    %c0_i32_0 = arith.constant 0 : i32
    %c0_i32_1 = arith.constant 0 : i32
    return %c0_i32, %c0_i32_0 : i32, i32
  }
  func.func @transform_4(%arg0: i32, %arg1: i32) -> (i32, i32, i32) {
    %c0_i32 = arith.constant 0 : i32
    %c0_i32_0 = arith.constant 0 : i32
    return %arg0, %c0_i32, %arg1 : i32, i32, i32
  }
}

</mosaic_0001>

<llo_original>
// kernel: tpu_custom_call.1
$region0: #{tpu_custom_call.1}
  #allocation0 [shape = 'u32[]', space=smem, size = 0x4, offset = 0x4, fixed_abs, tag = 'smem constant byte address 0x4 - core index']
  #allocation1 [shape = 'u32[144,128]{1,0:T(1,128)}', space=vmem, size = 0x12000, scoped, tag = 'internal scratch']
  %s0 = inlined_call_operand.vmem [shape: f32[2,4,256], index: 0, kind: input, shape index: {}]
  %s1 = inlined_call_operand.vmem [shape: f32[24,4], index: 1, kind: input, shape index: {}]
  %s2 = inlined_call_operand.vmem [shape: f32[24,1], index: 2, kind: input, shape index: {}]
  %s3 = inlined_call_operand.vmem [shape: f32[8,8], index: 3, kind: input, shape index: {}]
  %s4 = inlined_call_operand.hbm [shape: f32[2,8,256], index: 4, kind: output, shape index: {}]
  %s5 = sld [smem:[#allocation0]]
  $region49: #{tpu_custom_call.1} parent=0
    _
  %s7 = ssub.s32 1, %s5
  %s8 = scalar_select 0, %s7, %s5
  $region1: #{tpu_custom_call.1} parent=0
    #allocation2 [shape = 'u8[16384]{0}', space=vmem, size = 0x4000, scoped, tag = 'output window, operand 0']
    #allocation3 [shape = 's32[2]{0}', space=sflag, size = 0x8, scoped, tag = 'scoped memory for tpu_custom_call.1']
    %9 = vsyncpa [#allocation3], 0
    %s10 = scalar_lea.sflag [#allocation3], 1
    %11 = vsyncpa %s10, 0
    loop: start=0, step=1, limit=4
    $region2: #{tpu_custom_call.1} parent=1 // loop_pre_header
      _
    $region3: #{tpu_custom_call.1} parent=1 // loop_header
      %s13 = sphi 0, %s17
      %p14 = scmp.ge.s32.totalorder %s13, 4
      %s20 = sphi 0, %s32
      %s21 = sphi 0, %s28
      %s22 = sphi 0, %s20
      %s23 = sphi 0, %s21
      %s24 = sphi 0, %s22
      %s25 = sphi 0, %s23
      %s37 = sphi 0, %s39
      %s40 = sphi 0, %s37
      %s41 = sphi 0, %s40
      %s57 = sphi 0, %s41
      %s61 = sphi 0, %s61
      %s63 = sphi 0, %s61
      %s64 = sphi 0, %s63
      %s78 = sphi 0, %s64
      %s82 = sphi 0, %s82
      %s84 = sphi 0, %s82
      %s85 = sphi 0, %s84
      %s99 = sphi 0, %s85
      %s103 = sphi 0, %s103
      %s105 = sphi 0, %s103
      %s106 = sphi 0, %s105
      %s120 = sphi 0, %s106
      %s128 = sphi 0, %s130
      %s131 = sphi 0, %s128
      %s132 = sphi 0, %s131
      %s148 = sphi 0, %s132
    $region4: #{tpu_custom_call.1} parent=1 // loop_header_branch
      %16 = sbr.rel (%p14) target = $region8
    $region5: #{tpu_custom_call.1} parent=1 // loop_body
      %s18 = ssub.s32 %s13, 1
      %s19 = ssub.s32 %s13, 2
      %s26 = sadd.s32 1, %s21
      %p27 = scmp.ge.s32.totalorder %s26, 1
      %s28 = scalar_select %p27, 0, %s26
      %s29 = sadd.s32 1, %s20
      %s30 = scalar_select %p27, %s29, %s20
      %p31 = scmp.ge.s32.totalorder %s30, 2
      %s32 = scalar_select %p31, 0, %s30
      %s33 = ssub.s32 %s20, %s32
      %s34 = ssub.s32 %s21, %s28
      %s35 = sor.u32 %s33, %s34
      %p36 = scmp.eq.s32.totalorder %s35, 0
      %s38 = sadd.s32 %s37, 1
      %s39 = scalar_select %p36, %s37, %s38
      %p42 = pneg %p36
      %p43 = scmp.eq.s32.totalorder %s13, 1
      %p44 = por %p42, %p43
      %p45 = scmp.ne.s32.totalorder %s37, %s40
      %p46 = scmp.eq.s32.totalorder %s13, 0
      %p47 = por %p45, %p46
      %p48 = scmp.ne.s32.totalorder %s37, %s40
      %p49 = scmp.eq.s32.totalorder %s18, 1
      %p50 = por %p48, %p49
      %p51 = scmp.ne.s32.totalorder %s40, %s41
      %p52 = scmp.eq.s32.totalorder %s18, 0
      %p53 = por %p51, %p52
      %p54 = scmp.ne.s32.totalorder %s40, %s41
      %p55 = scmp.eq.s32.totalorder %s19, 1
      %p56 = por %p54, %p55
      %p58 = scmp.ne.s32.totalorder %s41, %s57
      %p59 = scmp.eq.s32.totalorder %s19, 0
      %p60 = por %p58, %p59
      %s62 = sadd.s32 %s61, 1
      %p65 = scmp.eq.s32.totalorder %s13, 1
      %p66 = scmp.ne.s32.totalorder %s61, %s63
      %p67 = scmp.eq.s32.totalorder %s13, 0
      %p68 = por %p66, %p67
      %p69 = scmp.ne.s32.totalorder %s61, %s63
      %p70 = scmp.eq.s32.totalorder %s18, 1
      %p71 = por %p69, %p70
      %p72 = scmp.ne.s32.totalorder %s63, %s64
      %p73 = scmp.eq.s32.totalorder %s18, 0
      %p74 = por %p72, %p73
      %p75 = scmp.ne.s32.totalorder %s63, %s64
      %p76 = scmp.eq.s32.totalorder %s19, 1
      %p77 = por %p75, %p76
      %p79 = scmp.ne.s32.totalorder %s64, %s78
      %p80 = scmp.eq.s32.totalorder %s19, 0
      %p81 = por %p79, %p80
      %s83 = sadd.s32 %s82, 1
      %p86 = scmp.eq.s32.totalorder %s13, 1
      %p87 = scmp.ne.s32.totalorder %s82, %s84
      %p88 = scmp.eq.s32.totalorder %s13, 0
      %p89 = por %p87, %p88
      %p90 = scmp.ne.s32.totalorder %s82, %s84
      %p91 = scmp.eq.s32.totalorder %s18, 1
      %p92 = por %p90, %p91
      %p93 = scmp.ne.s32.totalorder %s84, %s85
      %p94 = scmp.eq.s32.totalorder %s18, 0
      %p95 = por %p93, %p94
      %p96 = scmp.ne.s32.totalorder %s84, %s85
      %p97 = scmp.eq.s32.totalorder %s19, 1
      %p98 = por %p96, %p97
      %p100 = scmp.ne.s32.totalorder %s85, %s99
      %p101 = scmp.eq.s32.totalorder %s19, 0
      %p102 = por %p100, %p101
      %s104 = sadd.s32 %s103, 1
      %p107 = scmp.eq.s32.totalorder %s13, 1
      %p108 = scmp.ne.s32.totalorder %s103, %s105
      %p109 = scmp.eq.s32.totalorder %s13, 0
      %p110 = por %p108, %p109
      %p111 = scmp.ne.s32.totalorder %s103, %s105
      %p112 = scmp.eq.s32.totalorder %s18, 1
      %p113 = por %p111, %p112
      %p114 = scmp.ne.s32.totalorder %s105, %s106
      %p115 = scmp.eq.s32.totalorder %s18, 0
      %p116 = por %p114, %p115
      %p117 = scmp.ne.s32.totalorder %s105, %s106
      %p118 = scmp.eq.s32.totalorder %s19, 1
      %p119 = por %p117, %p118
      %p121 = scmp.ne.s32.totalorder %s106, %s120
      %p122 = scmp.eq.s32.totalorder %s19, 0
      %p123 = por %p121, %p122
      %s124 = ssub.s32 %s20, %s32
      %s125 = ssub.s32 %s21, %s28
      %s126 = sor.u32 %s124, %s125
      %p127 = scmp.eq.s32.totalorder %s126, 0
      %s129 = sadd.s32 %s128, 1
      %s130 = scalar_select %p127, %s128, %s129
      %p133 = pneg %p127
      %p134 = scmp.eq.s32.totalorder %s13, 1
      %p135 = por %p133, %p134
      %p136 = scmp.ne.s32.totalorder %s128, %s131
      %p137 = scmp.eq.s32.totalorder %s13, 0
      %p138 = por %p136, %p137
      %p139 = scmp.ne.s32.totalorder %s128, %s131
      %p140 = scmp.eq.s32.totalorder %s18, 1
      %p141 = por %p139, %p140
      %p142 = scmp.ne.s32.totalorder %s131, %s132
      %p143 = scmp.eq.s32.totalorder %s18, 0
      %p144 = por %p142, %p143
      %p145 = scmp.ne.s32.totalorder %s131, %s132
      %p146 = scmp.eq.s32.totalorder %s19, 1
      %p147 = por %p145, %p146
      %p149 = scmp.ne.s32.totalorder %s132, %s148
      %p150 = scmp.eq.s32.totalorder %s19, 0
      %p151 = por %p149, %p150
      %p152 = scmp.le.s32.totalorder 1, %s13
      %p153 = scmp.lt.s32.totalorder %s13, 3
      %p154 = pnand %p152, %p153
      %p155 = pneg %p154
      // Predicated region
      $region9: #{tpu_custom_call.1} parent=5 // pred_check
        _
      $region10: #{tpu_custom_call.1} parent=5 // pred_check_branch
        %157 = sbr.rel (%p154) target = $region12
      $region11: #{tpu_custom_call.1} parent=5 // pred_region
        %s158 = ssub.s32 %s13, 1
        // Predicated region
        $region13: #{tpu_custom_call.1} parent=11 // pred_check
          %p159 = pneg %p74
        $region14: #{tpu_custom_call.1} parent=11 // pred_check_branch
          %161 = sbr.rel (%p159) target = $region16
        $region15: #{tpu_custom_call.1} parent=11 // pred_region
          _
        $region16: #{tpu_custom_call.1} parent=11 // pred_fallthru
          _
        // Predicated region
        $region17: #{tpu_custom_call.1} parent=11 // pred_check
          %p162 = pneg %p95
        $region18: #{tpu_custom_call.1} parent=11 // pred_check_branch
          %164 = sbr.rel (%p162) target = $region20
        $region19: #{tpu_custom_call.1} parent=11 // pred_region
          _
        $region20: #{tpu_custom_call.1} parent=11 // pred_fallthru
          _
        // Predicated region
        $region21: #{tpu_custom_call.1} parent=11 // pred_check
          %p165 = pneg %p116
        $region22: #{tpu_custom_call.1} parent=11 // pred_check_branch
          %167 = sbr.rel (%p165) target = $region24
        $region23: #{tpu_custom_call.1} parent=11 // pred_region
          _
        $region24: #{tpu_custom_call.1} parent=11 // pred_fallthru
          _
      $region12: #{tpu_custom_call.1} parent=5 // pred_fallthru
        _
      %p168 = scmp.lt.s32.totalorder %s13, 2
      // Predicated region
      $region25: #{tpu_custom_call.1} parent=5 // pred_check
        %p169 = pneg %p168
      $region26: #{tpu_custom_call.1} parent=5 // pred_check_branch
        %171 = sbr.rel (%p169) target = $region28
      $region27: #{tpu_custom_call.1} parent=5 // pred_region
        // Predicated region
        $region29: #{tpu_custom_call.1} parent=27 // pred_check
          %p172 = pneg %p47
        $region30: #{tpu_custom_call.1} parent=27 // pred_check_branch
          %174 = sbr.rel (%p172) target = $region32
        $region31: #{tpu_custom_call.1} parent=27 // pred_region
          %s175 = smul.u32 2, %s21
          %p176 = scmp.lt.s32.totalorder %s20, 1
          %s177 = scalar_select %p176, %s20, 1
          %p178 = scmp.lt.s32.totalorder %s175, 1
          %s179 = scalar_select %p178, %s175, 1
          %s180 = smul.addr %s177, 2
          %s181 = sadd.s32 %s179, %s180
          %s182 = smul.addr %s181, 4
          %s183 = scalar_lea.vmem %s0, %s182
          %s184 = smul.u32 2, %s21
        $region32: #{tpu_custom_call.1} parent=27 // pred_fallthru
          _
      $region28: #{tpu_custom_call.1} parent=5 // pred_fallthru
        _
      %p185 = scmp.le.s32.totalorder 1, %s13
      %p186 = scmp.lt.s32.totalorder %s13, 3
      %p187 = pnand %p185, %p186
      %p188 = pneg %p187
      // Predicated region
      $region33: #{tpu_custom_call.1} parent=5 // pred_check
        _
      $region34: #{tpu_custom_call.1} parent=5 // pred_check_branch
        %190 = sbr.rel (%p187) target = $region36
      $region35: #{tpu_custom_call.1} parent=5 // pred_region
        %s191 = ssub.s32 %s13, 1
        %s192 = smul.u32 2, %s23
        %p193 = scmp.lt.s32.totalorder %s22, 1
        %s194 = scalar_select %p193, %s22, 1
        %p195 = scmp.lt.s32.totalorder %s192, 1
        %s196 = scalar_select %p195, %s192, 1
        %s197 = smul.addr %s194, 2
        %s198 = sadd.s32 %s196, %s197
        %s199 = smul.addr %s198, 4
        %s200 = scalar_lea.vmem %s0, %s199
        %p201 = pneg %p53
        %p202 = pneg %p50
        %p203 = pneg %p74
        %p204 = pneg %p71
        %p205 = pneg %p95
        %p206 = pneg %p92
        %p207 = pneg %p116
        %p208 = pneg %p113
        %p209 = pneg %p144
        %p210 = pneg %p141
        %s211 = sand.u32 %s131, 1
        %s212 = scalar_lea.sflag [#allocation3], %s211
        %s213 = sand.u32 %s131, 1
        %s214 = smul.addr %s213, 16
        %s215 = scalar_lea.vmem [#allocation2], %s214
        %s216 = smul.u32 2, %s23
        %p217 = scmp.lt.s32.totalorder %s22, 1
        %s218 = scalar_select %p217, %s22, 1
        %p219 = scmp.lt.s32.totalorder %s216, 1
        %s220 = scalar_select %p219, %s216, 1
        %s221 = smul.addr %s218, 2
        %s222 = sadd.s32 %s220, %s221
        %s223 = smul.addr %s222, 4
        %s224 = scalar_lea.vmem %s0, %s223
        %s225 = smul.u32 2, %s23
        %s226 = smul.u32 2, %s23
        %v227 = vld [vmem:[%s224] sm:$0xff]
        %v228 = vld [vmem:[%s1] sm:$0xff]
        %v229 = vld [vmem:[%s1 + $0x8] sm:$0xff]
        %v230 = vld [vmem:[%s1 + $0x10] sm:$0xff]
        %v231 = vld [vmem:[%s2] sm:$0xff]
        %v232 = vld [vmem:[%s2 + $0x8] sm:$0xff]
        %v233 = vld [vmem:[%s2 + $0x10] sm:$0xff]
        %235 = vset.pattern.permute.xlu0 0
        %236 = vperm.xlu0 %235, %v231
        %v237 = vpop.permute.xlu0 %236
        %240 = vset.pattern.permute.xlu0 0
        %241 = vperm.xlu0 %240, %v232
        %v242 = vpop.permute.xlu0 %241
        %245 = vset.pattern.permute.xlu0 0
        %246 = vperm.xlu0 %245, %v233
        %v247 = vpop.permute.xlu0 %246
        %v250 = vcombine.high %v227, %v227
        %vm251 = vcmask 31744
        %v253 = vsel %vm251, %v228, 0
        %v256 = vsel %vm251, %v229, 0
        %v259 = vsel %vm251, %v230, 0
        %vm261 = vcmask 1043456
        %v262 = vsel %vm261, %v227, 0
        %v264 = vsel %vm261, %v250, 0
        %266 = vmatprep.subr.mxu0 0.0
        %267 = vmatpush1.msra.mxu0 0.0
        %268 = vmatprep.subr.mxu0 0.0
        %269 = vmatpush1.msra.mxu0 0.0
        %270 = vmatprep.subr.mxu0 0.0
        %271 = vmatpush1.msra.mxu0 0.0
        %272 = vmatprep.subr.mxu0 0.0
        %273 = vmatpush1.msra.mxu0 0.0
        %274 = vmatprep.subr.mxu0 0.0
        %275 = vmatpush1.msra.mxu0 0.0
        %276 = vmatprep.subr.mxu0 0.0
        %277 = vmatpush1.msra.mxu0 0.0
        %278 = vmatprep.subr.mxu0 0.0
        %279 = vmatpush1.msra.mxu0 0.0
        %280 = vmatprep.subr.mxu0 0.0
        %281 = vmatpush1.msra.mxu0 0.0
        %282 = vmatprep.subr.mxu0 0.0
        %283 = vmatpush1.msra.mxu0 0.0
        %284 = vmatprep.subr.mxu0 0.0
        %285 = vmatpush1.msra.mxu0 0.0
        %286 = vmatprep.subr.mxu0 0.0
        %287 = vmatpush1.msra.mxu0 0.0
        %288 = vmatprep.subr.mxu0 0.0
        %289 = vmatpush1.msra.mxu0 0.0
        %290 = vmatprep.subr.mxu0 0.0
        %291 = vmatpush1.msra.mxu0 0.0
        %292 = vmatprep.subr.mxu0 0.0
        %293 = vmatpush1.msra.mxu0 0.0
        %294 = vmatprep.subr.mxu0 0.0
        %295 = vmatpush1.msra.mxu0 0.0
        %296 = vmatprep.subr.mxu0 %v264
        %297 = vmatpush1.msra.mxu0 %v262
        %298 = vmatprep.subr.mxu0 0.0
        %299 = vmatpush2.msra.mxu0 0.0
        %300 = vmatprep.subr.mxu0 0.0
        %301 = vmatpush2.msra.mxu0 0.0
        %302 = vmatprep.subr.mxu0 0.0
        %303 = vmatpush2.msra.mxu0 0.0
        %304 = vmatprep.subr.mxu0 0.0
        %305 = vmatpush2.msra.mxu0 0.0
        %306 = vmatprep.subr.mxu0 0.0
        %307 = vmatpush2.msra.mxu0 0.0
        %308 = vmatprep.subr.mxu0 0.0
        %309 = vmatpush2.msra.mxu0 0.0
        %310 = vmatprep.subr.mxu0 0.0
        %311 = vmatpush2.msra.mxu0 0.0
        %312 = vmatprep.subr.mxu0 0.0
        %313 = vmatpush2.msra.mxu0 0.0
        %314 = vmatprep.subr.mxu0 0.0
        %315 = vmatpush2.msra.mxu0 0.0
        %316 = vmatprep.subr.mxu0 0.0
        %317 = vmatpush2.msra.mxu0 0.0
        %318 = vmatprep.subr.mxu0 0.0
        %319 = vmatpush2.msra.mxu0 0.0
        %320 = vmatprep.subr.mxu0 0.0
        %321 = vmatpush2.msra.mxu0 0.0
        %322 = vmatprep.subr.mxu0 0.0
        %323 = vmatpush2.msra.mxu0 0.0
        %324 = vmatprep.subr.mxu0 0.0
        %325 = vmatpush2.msra.mxu0 0.0
        %326 = vmatprep.subr.mxu0 0.0
        %327 = vmatpush2.msra.mxu0 0.0
        %328 = vmatprep.subr.mxu0 0.0
        %329 = vmatpush2.msra.mxu0 0.0
        %330 = vmatprep.mubr.f32.mxu0 0.0
        %331 = vmatmul.mubr.f32.gmra.mxu0 %v253
        %v332 = vpop.f32.mrf.mxu0
        %v333 = vadd.f32 %v237, %v332
        %v334 = vpop.f32.mrf.mxu0
        %v335 = vadd.f32 %v237, %v334
        %336 = vmatprep.mubr.f32.mxu0 0.0
        %337 = vmatmul.mubr.f32.gmra.mxu0 %v256
        %v338 = vpop.f32.mrf.mxu0
        %v339 = vadd.f32 %v242, %v338
        %v340 = vpop.f32.mrf.mxu0
        %v341 = vadd.f32 %v242, %v340
        %342 = vmatprep.mubr.f32.mxu0 0.0
        %343 = vmatmul.mubr.f32.gmra.mxu0 %v259
        %v344 = vpop.f32.mrf.mxu0
        %v345 = vadd.f32 %v247, %v344
        %v346 = vpop.f32.mrf.mxu0
        %v347 = vadd.f32 %v247, %v346
        %348 = vdwg.mxu0
        %v349 = vxor.u32 %v339, 2147483648
        %v350 = vxor.u32 %v341, 2147483648
        %v351 = vmul.f32 %v349, 1.442695
        %v352 = vpow.pop %v351
        %v353 = vmul.f32 %v350, 1.442695
        %v354 = vpow.pop %v353
        %v355 = vadd.f32 %v352, 1.0
        %v356 = vadd.f32 %v354, 1.0
        %v357 = vrcp.pop %v355
        %v358 = vmul.f32 1.0, %v357
        %v359 = vrcp.pop %v356
        %v360 = vmul.f32 1.0, %v359
        %v361 = vmul.f32 %v333, %v358
        %v362 = vmul.f32 %v335, %v360
        %v363 = vld [vmem:[%s3] sm:$0xff]
        %vm364 = vcmask 64512
        %v366 = vsel %vm364, %v363, 0
        %368 = vmatprep.subr.mxu0 0.0
        %369 = vmatpush1.msra.mxu0 0.0
        %370 = vmatprep.subr.mxu0 0.0
        %371 = vmatpush1.msra.mxu0 0.0
        %372 = vmatprep.subr.mxu0 0.0
        %373 = vmatpush1.msra.mxu0 0.0
        %374 = vmatprep.subr.mxu0 0.0
        %375 = vmatpush1.msra.mxu0 0.0
        %376 = vmatprep.subr.mxu0 0.0
        %377 = vmatpush1.msra.mxu0 0.0
        %378 = vmatprep.subr.mxu0 0.0
        %379 = vmatpush1.msra.mxu0 0.0
        %380 = vmatprep.subr.mxu0 0.0
        %381 = vmatpush1.msra.mxu0 0.0
        %382 = vmatprep.subr.mxu0 0.0
        %383 = vmatpush1.msra.mxu0 0.0
        %384 = vmatprep.subr.mxu0 0.0
        %385 = vmatpush1.msra.mxu0 0.0
        %386 = vmatprep.subr.mxu0 0.0
        %387 = vmatpush1.msra.mxu0 0.0
        %388 = vmatprep.subr.mxu0 0.0
        %389 = vmatpush1.msra.mxu0 0.0
        %390 = vmatprep.subr.mxu0 0.0
        %391 = vmatpush1.msra.mxu0 0.0
        %392 = vmatprep.subr.mxu0 0.0
        %393 = vmatpush1.msra.mxu0 0.0
        %394 = vmatprep.subr.mxu0 0.0
        %395 = vmatpush1.msra.mxu0 0.0
        %396 = vmatprep.subr.mxu0 0.0
        %397 = vmatpush1.msra.mxu0 0.0
        %398 = vmatprep.subr.mxu0 %v362
        %399 = vmatpush1.msra.mxu0 %v361
        %400 = vmatprep.subr.mxu0 0.0
        %401 = vmatpush2.msra.mxu0 0.0
        %402 = vmatprep.subr.mxu0 0.0
        %403 = vmatpush2.msra.mxu0 0.0
        %404 = vmatprep.subr.mxu0 0.0
        %405 = vmatpush2.msra.mxu0 0.0
        %406 = vmatprep.subr.mxu0 0.0
        %407 = vmatpush2.msra.mxu0 0.0
        %408 = vmatprep.subr.mxu0 0.0
        %409 = vmatpush2.msra.mxu0 0.0
        %410 = vmatprep.subr.mxu0 0.0
        %411 = vmatpush2.msra.mxu0 0.0
        %412 = vmatprep.subr.mxu0 0.0
        %413 = vmatpush2.msra.mxu0 0.0
        %414 = vmatprep.subr.mxu0 0.0
        %415 = vmatpush2.msra.mxu0 0.0
        %416 = vmatprep.subr.mxu0 0.0
        %417 = vmatpush2.msra.mxu0 0.0
        %418 = vmatprep.subr.mxu0 0.0
        %419 = vmatpush2.msra.mxu0 0.0
        %420 = vmatprep.subr.mxu0 0.0
        %421 = vmatpush2.msra.mxu0 0.0
        %422 = vmatprep.subr.mxu0 0.0
        %423 = vmatpush2.msra.mxu0 0.0
        %424 = vmatprep.subr.mxu0 0.0
        %425 = vmatpush2.msra.mxu0 0.0
        %426 = vmatprep.subr.mxu0 0.0
        %427 = vmatpush2.msra.mxu0 0.0
        %428 = vmatprep.subr.mxu0 0.0
        %429 = vmatpush2.msra.mxu0 0.0
        %430 = vmatprep.subr.mxu0 0.0
        %431 = vmatpush2.msra.mxu0 0.0
        %432 = vmatprep.mubr.f32.mxu0 0.0
        %433 = vmatmul.mubr.f32.gmra.mxu0 %v366
        %v434 = vpop.f32.mrf.mxu0
        %v435 = vadd.f32 %v345, %v434
        %v436 = vpop.f32.mrf.mxu0
        %v437 = vadd.f32 %v347, %v436
        %438 = vdwg.mxu0
        %v439 = vmax.f32 %v435, 0.0
        %v440 = vmax.f32 %v437, 0.0
        %441 = vst [vmem:[%s215] sm:$0xff] %v439
        %442 = vst [vmem:[%s215 + $0x8] sm:$0xff] %v440
        %s443 = sand.u32 %s131, 1
        %s444 = scalar_lea.sflag [#allocation3], %s443
        %s445 = sand.u32 %s131, 1
        %s446 = smul.addr %s445, 16
        %s447 = scalar_lea.vmem [#allocation2], %s446
        // Predicated region
        $region37: #{tpu_custom_call.1} parent=35 // pred_check
          %p448 = pneg %p141
        $region38: #{tpu_custom_call.1} parent=35 // pred_check_branch
          %450 = sbr.rel (%p448) target = $region40
        $region39: #{tpu_custom_call.1} parent=35 // pred_region
          %s451 = smul.u32 2, %s23
          %s453 = ssub.s32 256, 256
          %454 = vsyncadd %s444, %s453
          %s455 = smul.addr %s22, 2
          %s456 = sadd.s32 %s451, %s455
          %s457 = smul.addr %s456, 128
          %s458 = scalar_lea.hbm %s4, %s457
          %s460 = sshll.u32 %s447, 4
          %s461 = int_to_ptr.vmem [resolvable:$true] %s460
          %463 = dma.vmem_to_hbm [thread:$0]  %s461, 256, %s458, %s444
        $region40: #{tpu_custom_call.1} parent=35 // pred_fallthru
          _
      $region36: #{tpu_custom_call.1} parent=5 // pred_fallthru
        _
      %p464 = scmp.le.s32.totalorder 2, %s13
      // Predicated region
      $region41: #{tpu_custom_call.1} parent=5 // pred_check
        %p465 = pneg %p464
      $region42: #{tpu_custom_call.1} parent=5 // pred_check_branch
        %467 = sbr.rel (%p465) target = $region44
      $region43: #{tpu_custom_call.1} parent=5 // pred_region
        %s468 = ssub.s32 %s13, 2
        // Predicated region
        $region45: #{tpu_custom_call.1} parent=43 // pred_check
          %p469 = pneg %p147
        $region46: #{tpu_custom_call.1} parent=43 // pred_check_branch
          %471 = sbr.rel (%p469) target = $region48
        $region47: #{tpu_custom_call.1} parent=43 // pred_region
          %s472 = sand.u32 %s132, 1
          %s473 = scalar_lea.sflag [#allocation3], %s472
          %s474 = sand.u32 %s132, 1
          %s475 = smul.addr %s474, 16
          %s476 = scalar_lea.vmem [#allocation2], %s475
          %477 = dma.done %s473, 256
        $region48: #{tpu_custom_call.1} parent=43 // pred_fallthru
          _
      $region44: #{tpu_custom_call.1} parent=5 // pred_fallthru
        _
    $region6: #{tpu_custom_call.1} parent=1 // loop_footer
      %s17 = sadd.s32 1, %s13
    $region7: #{tpu_custom_call.1} parent=1 // loop_footer_branch
      %12 = sbr.rel target = $region3
    $region8: #{tpu_custom_call.1} parent=1 // loop_exit
      _
    %478 = vsyncpa [#allocation3], 1
    %s479 = scalar_lea.sflag [#allocation3], 1
    %480 = vsyncpa %s479, 1

</llo_original>
